<compile_context>
chip_gen: v5e
topology: v5e:2x2
jax: 0.10.0
libtpu: 0.0.40
codegen_flags: <defaults>
</compile_context>

<pallas_src>
import functools
import math

import numpy as np
import jax
import jax.numpy as jnp
from jax.experimental import pallas as pl
from jax.experimental.pallas import tpu as pltpu

MAX_SEQ_LEN = 72

_LANE = 128                      # lane width (last dim alignment)
_TILE_BUDGET_BYTES = 3 << 20     # target bytes per x tile (x+out dbl-buffered -> ~12 MiB peak)
_BYPASS_BYTES = 256 << 10        # below this, plain XLA wins outright
_MIN_SPLIT_BYTES = 1 << 20       # guarantee >=2 parallel grid steps above this (v7x dual-TC)


def _round_up(a, b):
    return ((a + b - 1) // b) * b


# ----------------------------------------------------------------------------
# Positional-encoding buffer (identical formula to the PyTorch module).
# NOTE: reproduces the module's quirky exponent (2*i/d_model for sin,
# 2*(i+1)/d_model for cos) on purpose — NOT the canonical sinusoidal PE.
# Requires even d_model (the PyTorch module does too).
# ----------------------------------------------------------------------------
def make_positional_encoding(d_model, max_seq_len=MAX_SEQ_LEN):
    pe = np.zeros((max_seq_len, d_model), dtype=np.float32)
    for pos in range(max_seq_len):
        for i in range(0, d_model, 2):
            pe[pos, i] = math.sin(pos / 10000 ** (2 * i / d_model))
            pe[pos, i + 1] = math.cos(pos / 10000 ** (2 * (i + 1) / d_model))
    return jnp.asarray(pe)


# ----------------------------------------------------------------------------
# Pallas kernel: out = x * sqrt(d_model) + pe   (pe broadcast over batch rows)
# ----------------------------------------------------------------------------
def _pe_kernel(x_ref, pe_ref, o_ref, *, scale):
    # x_ref: (TN, TL)   pe_ref: (1, TL) f32   o_ref: (TN, TL)
    acc = x_ref[...].astype(jnp.float32) * scale + pe_ref[...]
    o_ref[...] = acc.astype(o_ref.dtype)


def positional_encode(x, pe, d_model, *, force_pallas=False):
    """x: (N, S, E), pe: (max_seq_len, E) f32. Returns (N, S, E), dtype of x."""
    N, S, E = x.shape
    assert E == d_model, f"d_model mismatch: x has {E}, expected {d_model}"
    assert S <= pe.shape[0], (
        f"seq_len {S} exceeds max_seq_len {pe.shape[0]} of the PE buffer")

    scale = math.sqrt(d_model)
    itemsize = x.dtype.itemsize
    total_bytes = N * S * E * itemsize

    # ---- tiny-input bypass: pallas_call is pure overhead at these sizes ----
    if not force_pallas and total_bytes < _BYPASS_BYTES:
        out = x.astype(jnp.float32) * scale + pe[:S].astype(jnp.float32)[None]
        return out.astype(x.dtype)

    # ---- tiling policy -----------------------------------------------------
    # sublane alignment: f32 -> 8, bf16/f16 -> 16, int8/fp8 -> 32
    row_align = {4: 8, 2: 16, 1: 32}.get(itemsize, 8)

    SE = S * E
    SEa = _round_up(SE, _LANE)
    Na = _round_up(N, row_align)

    elems = max(row_align * _LANE, _TILE_BUDGET_BYTES // itemsize)

    # lane tile: whole row if a minimal-height tile fits the budget, else chunk
    if row_align * SEa <= elems:
        TL = SEa
    else:
        TL = max(_LANE, (elems // row_align) // _LANE * _LANE)

    # row tile: as many sublane-aligned rows as fit the budget
    tn = min(Na, max(row_align, (elems // TL) // row_align * row_align))

    # v7x: make sure the "parallel" axes have >= 2 steps for non-trivial work
    # so both TensorCores (each with its own HBM path) get a share.
    padded_bytes = Na * SEa * itemsize
    if padded_bytes >= _MIN_SPLIT_BYTES and pl.cdiv(Na, tn) < 2 and pl.cdiv(SEa, TL) < 2:
        if Na >= 2 * row_align:
            tn = _round_up(pl.cdiv(Na, 2), row_align)
        elif SEa >= 2 * _LANE:
            TL = _round_up(pl.cdiv(SEa, 2), _LANE)

    # final padded shape: tiles divide evenly -> every store is unmasked
    Np = _round_up(N, tn)
    SEp = _round_up(SE, TL)
    grid = (Np // tn, SEp // TL)

    # ---- data prep ----------------------------------------------------------
    x2 = x.reshape(N, SE)
    pe2 = pe[:S].astype(jnp.float32).reshape(1, SE)
    padded = (Np != N) or (SEp != SE)
    if padded:
        x2 = jnp.pad(x2, ((0, Np - N), (0, SEp - SE)))
    if SEp != SE:
        pe2 = jnp.pad(pe2, ((0, 0), (0, SEp - SE)))

    # ---- VMEM budget: x + out double-buffered, pe double-buffered ----------
    tile_x_bytes = tn * TL * itemsize
    tile_o_bytes = tn * TL * itemsize          # out dtype == x dtype
    tile_pe_bytes = TL * 4
    peak = 2 * (tile_x_bytes + tile_o_bytes + tile_pe_bytes)
    vmem_limit = int(min(max(2 * peak, 16 << 20), 32 << 20))

    # donate the padded x slab only when it is a fresh intermediate buffer
    # (otherwise XLA could insert a defensive copy and double HBM traffic).
    aliases = {0: 0} if padded else {}

    out2 = pl.pallas_call(
        functools.partial(_pe_kernel, scale=scale),
        out_shape=jax.ShapeDtypeStruct((Np, SEp), x.dtype),
        grid=grid,
        in_specs=[
            pl.BlockSpec((tn, TL), lambda i, j: (i, j)),   # x tile
            pl.BlockSpec((1, TL), lambda i, j: (0, j)),    # pe lane chunk (row-bcast)
        ],
        out_specs=pl.BlockSpec((tn, TL), lambda i, j: (i, j)),
        input_output_aliases=aliases,
        compiler_params=pltpu.CompilerParams(
            dimension_semantics=("parallel", "parallel"),
            vmem_limit_bytes=vmem_limit,
        ),
    )(x2, pe2)

    if padded:
        out2 = out2[:N, :SE]
    return out2.reshape(N, S, E)


# ----------------------------------------------------------------------------
if __name__ == "__main__":
    # Small shapes consistent with the module: batch=2, seq=8, d_model=32.
    N, S, E = 2, 8, 32

    key = jax.random.PRNGKey(0)
    x = jax.random.normal(key, (N, S, E), jnp.float32)
    pe = make_positional_encoding(E, MAX_SEQ_LEN)

    ref = x * math.sqrt(E) + pe[:S][None, :, :]

    # 1) Pallas kernel path (forced — this toy shape would normally bypass).
    out = jax.block_until_ready(positional_encode(x, pe, E, force_pallas=True))
    assert out.shape == (N, S, E), out.shape
    np.testing.assert_allclose(np.asarray(out), np.asarray(ref),
                               rtol=1e-6, atol=1e-6)

    # 2) Padding path: N not a multiple of 8, S*E not a multiple of 128.
    N2, S2 = 5, 7
    x2 = jax.random.normal(jax.random.PRNGKey(1), (N2, S2, E), jnp.float32)
    ref2 = x2 * math.sqrt(E) + pe[:S2][None, :, :]
    out2 = jax.block_until_ready(positional_encode(x2, pe, E, force_pallas=True))
    np.testing.assert_allclose(np.asarray(out2), np.asarray(ref2),
                               rtol=1e-6, atol=1e-6)

    # 3) Tiny-input XLA bypass gives identical results.
    out3 = jax.block_until_ready(positional_encode(x, pe, E))
    np.testing.assert_allclose(np.asarray(out3), np.asarray(ref),
                               rtol=1e-6, atol=1e-6)

    print("KERNEL_OK")
</pallas_src>

<mosaic_0001>
module attributes {stable_mosaic.version = 11 : i64} {
  func.func @_pe_kernel(%arg0: i32, %arg1: i32, %arg2: memref<8x256xf32, #tpu.memory_space<vmem>>, %arg3: memref<1x256xf32, #tpu.memory_space<vmem>>, %arg4: memref<8x256xf32, #tpu.memory_space<vmem>>) attributes {dimension_semantics = [#tpu.dimension_semantics<parallel>, #tpu.dimension_semantics<parallel>], iteration_bounds = array<i64: 1, 1>, scalar_prefetch = 0 : i64, scratch_operands = 0 : i64, tpu.core_type = #tpu.core_type<tc>, window_params = [{transform_indices = @transform_0, window_bounds = array<i64: 8, 256>}, {transform_indices = @transform_1, window_bounds = array<i64: 1, 256>}, {transform_indices = @transform_2, window_bounds = array<i64: 8, 256>}]} {
    %c0 = arith.constant 0 : index
    %c0_0 = arith.constant 0 : index
    %0 = vector.load %arg2[%c0, %c0_0] : memref<8x256xf32, #tpu.memory_space<vmem>>, vector<8x256xf32>
    %cst = arith.constant 5.65685415 : f32
    %1 = vector.broadcast %cst : f32 to vector<8x256xf32>
    %2 = arith.mulf %0, %1 : vector<8x256xf32>
    %c0_1 = arith.constant 0 : index
    %c0_2 = arith.constant 0 : index
    %3 = vector.load %arg3[%c0_1, %c0_2] : memref<1x256xf32, #tpu.memory_space<vmem>>, vector<1x256xf32>
    %4 = vector.broadcast %3 : vector<1x256xf32> to vector<8x256xf32>
    %5 = arith.addf %2, %4 : vector<8x256xf32>
    %c0_3 = arith.constant 0 : index
    %c0_4 = arith.constant 0 : index
    %6 = vector.load %arg4[%c0_3, %c0_4] : memref<8x256xf32, #tpu.memory_space<vmem>>, vector<8x256xf32>
    tpu.vector_store %arg4[%c0_3, %c0_4], %5 {strides = array<i32>} : memref<8x256xf32, #tpu.memory_space<vmem>>, vector<8x256xf32>,
    return
  }
  func.func @transform_0(%arg0: i32, %arg1: i32) -> (i32, i32) {
    %c0_i32 = arith.constant 0 : i32
    return %arg0, %arg1 : i32, i32
  }
  func.func @transform_1(%arg0: i32, %arg1: i32) -> (i32, i32) {
    %c0_i32 = arith.constant 0 : i32
    %c0_i32_0 = arith.constant 0 : i32
    return %c0_i32, %arg1 : i32, i32
  }
  func.func @transform_2(%arg0: i32, %arg1: i32) -> (i32, i32) {
    %c0_i32 = arith.constant 0 : i32
    return %arg0, %arg1 : i32, i32
  }
}

</mosaic_0001>

<llo_original>
// kernel: tpu_custom_call.1
$region0: #{tpu_custom_call.1}
  #allocation0 [shape = 'u32[]', space=smem, size = 0x4, offset = 0x4, fixed_abs, tag = 'smem constant byte address 0x4 - core index']
  #allocation1 [shape = 'u32[72,128]{1,0:T(1,128)}', space=vmem, size = 0x9000, scoped, tag = 'internal scratch']
  %s0 = inlined_call_operand.hbm [shape: f32[8,256], index: 0, kind: input, shape index: {}, may-alias: {0,2}]
  %s1 = inlined_call_operand.vmem [shape: f32[1,256], index: 1, kind: input, shape index: {}]
  %s2 = inlined_call_operand.hbm [shape: f32[8,256], index: 2, kind: output, shape index: {}, may-alias: {0,2}]
  %s3 = sld [smem:[#allocation0]]
  $region22: #{tpu_custom_call.1} parent=0
    _
  %s5 = ssub.s32 1, %s3
  %s6 = scalar_select 0, %s5, %s3
  $region1: #{tpu_custom_call.1} parent=0
    #allocation2 [shape = 'u8[8192]{0}', space=vmem, size = 0x2000, scoped, tag = 'input window, operand 0, single buffered']
    #allocation3 [shape = 's32[1]{0}', space=sflag, size = 0x4, scoped, tag = 'scoped memory for tpu_custom_call.1']
    #allocation4 [shape = 's32[1]{0}', space=sflag, size = 0x4, scoped, tag = 'scoped memory for tpu_custom_call.1']
    #allocation5 [shape = 'u8[8192]{0}', space=vmem, size = 0x2000, scoped, tag = 'output window, operand 0, single buffered']
    %7 = vsyncpa [#allocation3], 0
    %8 = vsyncpa [#allocation4], 0
    // Predicated region
    $region2: #{tpu_custom_call.1} parent=1 // pred_check
      _
    $region3: #{tpu_custom_call.1} parent=1 // pred_check_branch
      %10 = sbr.rel (0) target = $region5
    $region4: #{tpu_custom_call.1} parent=1 // pred_region
      %12 = vsyncadd [#allocation3], 0
      %s14 = sshll.u32 %s0, 4
      %s15 = int_to_ptr.hbm [resolvable:$true] %s14
      %s16 = sshll.u32 [#allocation2], 4
      %s17 = int_to_ptr.vmem [resolvable:$true] %s16
      %19 = dma.hbm_to_vmem [thread:$0]  %s15, 256, %s17, [#allocation3]
    $region5: #{tpu_custom_call.1} parent=1 // pred_fallthru
      _
    // Predicated region
    $region6: #{tpu_custom_call.1} parent=1 // pred_check
      _
    $region7: #{tpu_custom_call.1} parent=1 // pred_check_branch
      %21 = sbr.rel (0) target = $region9
    $region8: #{tpu_custom_call.1} parent=1 // pred_region
      _
    $region9: #{tpu_custom_call.1} parent=1 // pred_fallthru
      _
    // Predicated region
    $region10: #{tpu_custom_call.1} parent=1 // pred_check
      _
    $region11: #{tpu_custom_call.1} parent=1 // pred_check_branch
      %23 = sbr.rel (0) target = $region13
    $region12: #{tpu_custom_call.1} parent=1 // pred_region
      %25 = dma.done [#allocation3], 256
    $region13: #{tpu_custom_call.1} parent=1 // pred_fallthru
      _
    %v26 = vld [vmem:[#allocation2] sm:$0xff]
    %v27 = vld [vmem:[#allocation2 + $0x8] sm:$0xff]
    %v28 = vmul.f32 %v26, 5.656854
    %v29 = vmul.f32 %v27, 5.656854
    %v30 = vld [vmem:[%s1] sm:$0x3]
    %v32 = vperm.slane %v30, 0
    %v33 = vperm.slane %v30, 1
    %v36 = vadd.f32 %v28, %v32
    %v37 = vadd.f32 %v29, %v33
    %38 = vst [vmem:[#allocation5] sm:$0xff] %v36
    %39 = vst [vmem:[#allocation5 + $0x8] sm:$0xff] %v37
    // Predicated region
    $region14: #{tpu_custom_call.1} parent=1 // pred_check
      _
    $region15: #{tpu_custom_call.1} parent=1 // pred_check_branch
      %41 = sbr.rel (0) target = $region17
    $region16: #{tpu_custom_call.1} parent=1 // pred_region
      %43 = vsyncadd [#allocation4], 0
      %s45 = sshll.u32 [#allocation5], 4
      %s46 = int_to_ptr.vmem [resolvable:$true] %s45
      %s47 = sshll.u32 %s2, 4
      %s48 = int_to_ptr.hbm [resolvable:$true] %s47
      %50 = dma.vmem_to_hbm [thread:$0]  %s46, 256, %s48, [#allocation4]
    $region17: #{tpu_custom_call.1} parent=1 // pred_fallthru
      _
    // Predicated region
    $region18: #{tpu_custom_call.1} parent=1 // pred_check
      _
    $region19: #{tpu_custom_call.1} parent=1 // pred_check_branch
      %52 = sbr.rel (0) target = $region21
    $region20: #{tpu_custom_call.1} parent=1 // pred_region
      %54 = dma.done [#allocation4], 256
    $region21: #{tpu_custom_call.1} parent=1 // pred_fallthru
      _
    %55 = vsyncpa [#allocation3], 1
    %56 = vsyncpa [#allocation4], 1

</llo_original>
